<compile_context>
chip_gen: v7x
topology: tpu7x:2x2x1
jax: 0.10.0
libtpu: 0.0.40
codegen_flags: <defaults>
</compile_context>

<pallas_src>
import numpy as np

import jax
import jax.numpy as jnp
from jax.experimental import pallas as pl
from jax.experimental.pallas import tpu as pltpu


def _cplx_convt1d_kernel(x_ref, w_ref, o_ref):
    """One (batch sample n, output-column tile t) grid step.

    x_ref : (2*Cin, W_total)     merged [real; imag] padded plane of sample n
                                 (block index constant over t -> DMA'd once)
    w_ref : (K, 2*Cout, 2*Cin)   per-tap block-complex weights [[Wr,-Wi],[Wi,Wr]]
    o_ref : (2*Cout, TL)         fused [real; imag] output tile (lane-dense)
    """
    K = w_ref.shape[0]
    TL = o_ref.shape[-1]
    halo = ((K - 1) + 127) // 128 * 128          # lane-aligned halo width

    t = pl.program_id(1)
    col0 = pl.multiple_of(t * TL, 128)
    # Single aligned load of the window; the K tap shifts below are pure
    # in-register lane rotations (XLU slot), not K misaligned vector loads.
    xw = x_ref[:, pl.ds(col0, TL + halo)]        # (2*Cin, TL + halo)

    acc = jnp.zeros(o_ref.shape, jnp.float32)
    for k in range(K):                           # K is small & static: unrolled
        acc = acc + jnp.dot(w_ref[k], xw[:, k:k + TL],
                            preferred_element_type=jnp.float32)
    o_ref[...] = acc


def complex_conv_transpose1d(x: jax.Array, w: jax.Array, *,
                             tile_l: int = 128,
                             operand_dtype=jnp.float32) -> jax.Array:
    """Complex ConvTranspose1d (stride=1, padding=0, groups=1, no bias).

    x : complex64 (N, Cin, L)
    w : complex64 (Cin, Cout, K)   (PyTorch ConvTranspose1d weight layout)
    returns complex64 (N, Cout, L + K - 1)
    """
    N, Cin, L = x.shape
    Cin_w, Cout, K = w.shape
    assert Cin_w == Cin, "groups != 1 not supported"
    assert tile_l % 128 == 0, "output tile must be lane-dense (multiple of 128)"

    L_out = L + K - 1
    TL = tile_l
    T = pl.cdiv(L_out, TL)
    halo = ((K - 1) + 127) // 128 * 128
    W_total = T * TL + halo

    # ---- merged [real; imag] input plane; left pad K-1 (transposed conv ==
    # full conv of the padded input), right pad to the aligned window width.
    xr = jnp.real(x).astype(jnp.float32)
    xi = jnp.imag(x).astype(jnp.float32)
    x2 = jnp.concatenate([xr, xi], axis=1)                       # (N, 2Cin, L)
    x2 = jnp.pad(x2, ((0, 0), (0, 0), (K - 1, W_total - (K - 1) - L)))
    x2 = x2.astype(operand_dtype)

    # ---- per-tap block-complex weight.  Equivalent forward-conv weight is
    # w_conv[co, ci, k] = w[ci, co, K-1-k].
    w_conv = jnp.flip(jnp.transpose(w, (1, 0, 2)), axis=-1)      # (Cout, Cin, K)
    wr = jnp.real(w_conv).astype(jnp.float32)
    wi = jnp.imag(w_conv).astype(jnp.float32)
    w_blk = jnp.concatenate(
        [jnp.concatenate([wr, -wi], axis=1),
         jnp.concatenate([wi, wr], axis=1)], axis=0)             # (2Cout, 2Cin, K)
    w_blk = jnp.transpose(w_blk, (2, 0, 1)).astype(operand_dtype)  # (K,2Cout,2Cin)

    # ---- VMEM budget (double-buffered blocks + margin), clamped to the
    # smallest physical VMEM across v5e/v6e/v7x.
    esize = np.dtype(operand_dtype).itemsize
    x_block_bytes = 2 * Cin * W_total * esize
    w_bytes = K * (2 * Cout) * (2 * Cin) * esize
    o_block_bytes = (2 * Cout) * TL * 4
    vmem_bytes = int(min(64 << 20,
                         max(4 << 20,
                             3 * (x_block_bytes + w_bytes + o_block_bytes))))

    cost = pl.CostEstimate(
        flops=2 * (2 * Cout) * (2 * Cin) * K * TL * N * T,
        transcendentals=0,
        bytes_accessed=(N * 2 * Cin * W_total * esize
                        + w_bytes
                        + N * 2 * Cout * T * TL * 4))

    out = pl.pallas_call(
        _cplx_convt1d_kernel,
        out_shape=jax.ShapeDtypeStruct((N, 2 * Cout, T * TL), jnp.float32),
        grid_spec=pltpu.PrefetchScalarGridSpec(
            num_scalar_prefetch=0,
            grid=(N, T),                      # batch outer (megacore), L tiles inner
            in_specs=[
                pl.BlockSpec((None, 2 * Cin, W_total), lambda n, t: (n, 0, 0)),
                pl.BlockSpec((K, 2 * Cout, 2 * Cin), lambda n, t: (0, 0, 0)),
            ],
            out_specs=pl.BlockSpec((None, 2 * Cout, TL), lambda n, t: (n, 0, t)),
        ),
        compiler_params=pltpu.CompilerParams(
            dimension_semantics=("parallel", "parallel"),
            vmem_limit_bytes=vmem_bytes),
        cost_estimate=cost,
    )(x2, w_blk)

    # unpack fused lane-dense output: (N, 2Cout, T*TL) -> complex (N, Cout, L_out)
    out = out[:, :, :L_out]
    return jax.lax.complex(out[:, :Cout, :], out[:, Cout:, :]).astype(jnp.complex64)


def _reference_convt1d(x, w):
    """Pure-JAX f32 reference complex ConvTranspose1d (stride=1, pad=0)."""
    N, Cin, L = x.shape
    _, Cout, K = w.shape
    xr = jnp.real(x).astype(jnp.float32)
    xi = jnp.imag(x).astype(jnp.float32)
    wr = jnp.real(w).astype(jnp.float32)
    wi = jnp.imag(w).astype(jnp.float32)

    def convT(a, b):                          # a: (N,Cin,L), b: (Cin,Cout,K)
        y = jnp.zeros((N, Cout, L + K - 1), jnp.float32)
        for k in range(K):
            y = y.at[:, :, k:k + L].add(
                jnp.einsum("ncl,co->nol", a, b[:, :, k],
                           precision=jax.lax.Precision.HIGHEST))
        return y

    yr = convT(xr, wr) - convT(xi, wi)
    yi = convT(xr, wi) + convT(xi, wr)
    return (yr + 1j * yi).astype(jnp.complex64)


if __name__ == "__main__":
    # Module config: ConvTranspose1d(in_channels=4, out_channels=8,
    #   kernel_size=3, stride=1, padding=0, output_padding=0, dilation=1,
    #   groups=1, bias=False, dtype=cfloat)
    N, Cin, Cout, L, K = 2, 4, 8, 16, 3

    key = jax.random.PRNGKey(0)
    kxr, kxi, kwr, kwi = jax.random.split(key, 4)

    x = (jax.random.normal(kxr, (N, Cin, L), jnp.float32)
         + 1j * jax.random.normal(kxi, (N, Cin, L), jnp.float32)
         ).astype(jnp.complex64)

    # Deterministic weight init (stand-in for PyTorch's kaiming-uniform).
    bound = 1.0 / (Cin * K) ** 0.5
    w = (jax.random.uniform(kwr, (Cin, Cout, K), jnp.float32, -bound, bound)
         + 1j * jax.random.uniform(kwi, (Cin, Cout, K), jnp.float32, -bound, bound)
         ).astype(jnp.complex64)

    y = jax.block_until_ready(complex_conv_transpose1d(x, w))
    y_ref = _reference_convt1d(x, w)

    assert y.shape == (N, Cout, L + K - 1)
    assert y.dtype == jnp.complex64
    # Tolerance covers MXU f32 matmul rounding vs the HIGHEST-precision
    # XLA reference; any structural/index bug would be orders larger.
    assert jnp.allclose(y, y_ref, atol=2e-2, rtol=2e-2), "mismatch vs reference"

    print("KERNEL_OK")
</pallas_src>

<mosaic_0001>
module attributes {stable_mosaic.version = 11 : i64} {
  func.func @_cplx_convt1d_kernel(%arg0: i32, %arg1: i32, %arg2: memref<1x8x256xf32, #tpu.memory_space<vmem>>, %arg3: memref<3x16x8xf32, #tpu.memory_space<vmem>>, %arg4: memref<1x16x128xf32, #tpu.memory_space<vmem>>) attributes {dimension_semantics = [#tpu.dimension_semantics<parallel>, #tpu.dimension_semantics<parallel>], iteration_bounds = array<i64: 2, 1>, scalar_prefetch = 0 : i64, scratch_operands = 0 : i64, tpu.core_type = #tpu.core_type<tc>, window_params = [{transform_indices = @transform_0, window_bounds = array<i64: 1, 8, 256>}, {pipeline_mode = #tpu.pipeline_mode<synchronous>, transform_indices = @transform_1, window_bounds = array<i64: 3, 16, 8>}, {transform_indices = @transform_2, window_bounds = array<i64: 1, 16, 128>}]} {
    %c128_i32 = arith.constant 128 : i32
    %0 = arith.muli %arg1, %c128_i32 : i32
    %1 = tpu.assume_multiple %0, 128 : i32
    %c0 = arith.constant 0 : index
    %c0_0 = arith.constant 0 : index
    %2 = arith.index_cast %1 : i32 to index
    %3 = vector.load %arg2[%c0, %c0_0, %2] : memref<1x8x256xf32, #tpu.memory_space<vmem>>, vector<1x8x256xf32>
    %4 = vector.shape_cast %3 : vector<1x8x256xf32> to vector<8x256xf32>
    %cst = arith.constant 0.000000e+00 : f32
    %5 = vector.broadcast %cst : f32 to vector<16x128xf32>
    %c0_1 = arith.constant 0 : index
    %c0_2 = arith.constant 0 : index
    %c0_3 = arith.constant 0 : index
    %6 = vector.load %arg3[%c0_1, %c0_2, %c0_3] : memref<3x16x8xf32, #tpu.memory_space<vmem>>, vector<1x16x8xf32>
    %7 = vector.shape_cast %6 : vector<1x16x8xf32> to vector<16x8xf32>
    %8 = vector.extract_strided_slice %4 {offsets = [0, 0], sizes = [8, 128], strides = [1, 1]} : vector<8x256xf32> to vector<8x128xf32>
    %cst_4 = arith.constant dense<0.000000e+00> : vector<16x128xf32>
    %9 = tpu.matmul %7, %8, %cst_4 {dimension_numbers = #tpu.dot_dimension_numbers<[1], [0], [0], [1], [0, 0, 1, 1], [], []>} : vector<16x8xf32>, vector<8x128xf32>, vector<16x128xf32> -> vector<16x128xf32>
    %10 = arith.addf %5, %9 : vector<16x128xf32>
    %c1 = arith.constant 1 : index
    %c0_5 = arith.constant 0 : index
    %c0_6 = arith.constant 0 : index
    %11 = vector.load %arg3[%c1, %c0_5, %c0_6] : memref<3x16x8xf32, #tpu.memory_space<vmem>>, vector<1x16x8xf32>
    %12 = vector.shape_cast %11 : vector<1x16x8xf32> to vector<16x8xf32>
    %13 = vector.extract_strided_slice %4 {offsets = [0, 1], sizes = [8, 128], strides = [1, 1]} : vector<8x256xf32> to vector<8x128xf32>
    %cst_7 = arith.constant dense<0.000000e+00> : vector<16x128xf32>
    %14 = tpu.matmul %12, %13, %cst_7 {dimension_numbers = #tpu.dot_dimension_numbers<[1], [0], [0], [1], [0, 0, 1, 1], [], []>} : vector<16x8xf32>, vector<8x128xf32>, vector<16x128xf32> -> vector<16x128xf32>
    %15 = arith.addf %10, %14 : vector<16x128xf32>
    %c2 = arith.constant 2 : index
    %c0_8 = arith.constant 0 : index
    %c0_9 = arith.constant 0 : index
    %16 = vector.load %arg3[%c2, %c0_8, %c0_9] : memref<3x16x8xf32, #tpu.memory_space<vmem>>, vector<1x16x8xf32>
    %17 = vector.shape_cast %16 : vector<1x16x8xf32> to vector<16x8xf32>
    %18 = vector.extract_strided_slice %4 {offsets = [0, 2], sizes = [8, 128], strides = [1, 1]} : vector<8x256xf32> to vector<8x128xf32>
    %cst_10 = arith.constant dense<0.000000e+00> : vector<16x128xf32>
    %19 = tpu.matmul %17, %18, %cst_10 {dimension_numbers = #tpu.dot_dimension_numbers<[1], [0], [0], [1], [0, 0, 1, 1], [], []>} : vector<16x8xf32>, vector<8x128xf32>, vector<16x128xf32> -> vector<16x128xf32>
    %20 = arith.addf %15, %19 : vector<16x128xf32>
    %c0_11 = arith.constant 0 : index
    %c0_12 = arith.constant 0 : index
    %c0_13 = arith.constant 0 : index
    %21 = vector.load %arg4[%c0_11, %c0_12, %c0_13] : memref<1x16x128xf32, #tpu.memory_space<vmem>>, vector<1x16x128xf32>
    %22 = vector.shape_cast %21 : vector<1x16x128xf32> to vector<16x128xf32>
    %23 = vector.shape_cast %20 : vector<16x128xf32> to vector<1x16x128xf32>
    tpu.vector_store %arg4[%c0_11, %c0_12, %c0_13], %23 {strides = array<i32>} : memref<1x16x128xf32, #tpu.memory_space<vmem>>, vector<1x16x128xf32>,
    return
  }
  func.func @transform_0(%arg0: i32, %arg1: i32) -> (i32, i32, i32) {
    %c0_i32 = arith.constant 0 : i32
    %c0_i32_0 = arith.constant 0 : i32
    %c0_i32_1 = arith.constant 0 : i32
    return %arg0, %c0_i32, %c0_i32_0 : i32, i32, i32
  }
  func.func @transform_1(%arg0: i32, %arg1: i32) -> (i32, i32, i32) {
    %c0_i32 = arith.constant 0 : i32
    %c0_i32_0 = arith.constant 0 : i32
    %c0_i32_1 = arith.constant 0 : i32
    %c0_i32_2 = arith.constant 0 : i32
    return %c0_i32, %c0_i32_0, %c0_i32_1 : i32, i32, i32
  }
  func.func @transform_2(%arg0: i32, %arg1: i32) -> (i32, i32, i32) {
    %c0_i32 = arith.constant 0 : i32
    %c0_i32_0 = arith.constant 0 : i32
    return %arg0, %c0_i32, %arg1 : i32, i32, i32
  }
}

</mosaic_0001>

<llo_original>
// kernel: tpu_custom_call.1
$region0: #{tpu_custom_call.1}
  #allocation0 [shape = 'u32[]', space=smem, size = 0x4, offset = 0x4, fixed_abs, tag = 'smem constant byte address 0x4 - core index']
  #allocation1 [shape = 'u32[144,128]{1,0:T(1,128)}', space=vmem, size = 0x12000, scoped, tag = 'internal scratch']
  %s0 = inlined_call_operand.vmem [shape: f32[2,8,256], index: 0, kind: input, shape index: {}]
  %s1 = inlined_call_operand.vmem [shape: f32[3,16,8], index: 1, kind: input, shape index: {}]
  %s2 = inlined_call_operand.hbm [shape: f32[2,16,128], index: 2, kind: output, shape index: {}]
  %s3 = sld [smem:[#allocation0]]
  $region41: #{tpu_custom_call.1} parent=0
    _
  %s5 = ssub.s32 1, %s3
  %s6 = scalar_select 0, %s5, %s3
  $region1: #{tpu_custom_call.1} parent=0
    #allocation2 [shape = 'u8[16384]{0}', space=vmem, size = 0x4000, scoped, tag = 'output window, operand 0']
    #allocation3 [shape = 's32[2]{0}', space=sflag, size = 0x8, scoped, tag = 'scoped memory for tpu_custom_call.1']
    %7 = vsyncpa [#allocation3], 0
    %s8 = scalar_lea.sflag [#allocation3], 1
    %9 = vsyncpa %s8, 0
    loop: start=0, step=1, limit=4
    $region2: #{tpu_custom_call.1} parent=1 // loop_pre_header
      _
    $region3: #{tpu_custom_call.1} parent=1 // loop_header
      %s11 = sphi 0, %s15
      %p12 = scmp.ge.s32.totalorder %s11, 4
      %s18 = sphi 0, %s30
      %s19 = sphi 0, %s26
      %s20 = sphi 0, %s18
      %s21 = sphi 0, %s19
      %s22 = sphi 0, %s20
      %s23 = sphi 0, %s21
      %s33 = sphi 0, %s35
      %s36 = sphi 0, %s33
      %s37 = sphi 0, %s36
      %s53 = sphi 0, %s37
      %s57 = sphi 0, %s57
      %s59 = sphi 0, %s57
      %s60 = sphi 0, %s59
      %s74 = sphi 0, %s60
      %s82 = sphi 0, %s84
      %s85 = sphi 0, %s82
      %s86 = sphi 0, %s85
      %s102 = sphi 0, %s86
    $region4: #{tpu_custom_call.1} parent=1 // loop_header_branch
      %14 = sbr.rel (%p12) target = $region8
    $region5: #{tpu_custom_call.1} parent=1 // loop_body
      %s16 = ssub.s32 %s11, 1
      %s17 = ssub.s32 %s11, 2
      %s24 = sadd.s32 1, %s19
      %p25 = scmp.ge.s32.totalorder %s24, 1
      %s26 = scalar_select %p25, 0, %s24
      %s27 = sadd.s32 1, %s18
      %s28 = scalar_select %p25, %s27, %s18
      %p29 = scmp.ge.s32.totalorder %s28, 2
      %s30 = scalar_select %p29, 0, %s28
      %s31 = ssub.s32 %s18, %s30
      %p32 = scmp.eq.s32.totalorder %s31, 0
      %s34 = sadd.s32 %s33, 1
      %s35 = scalar_select %p32, %s33, %s34
      %p38 = pneg %p32
      %p39 = scmp.eq.s32.totalorder %s11, 1
      %p40 = por %p38, %p39
      %p41 = scmp.ne.s32.totalorder %s33, %s36
      %p42 = scmp.eq.s32.totalorder %s11, 0
      %p43 = por %p41, %p42
      %p44 = scmp.ne.s32.totalorder %s33, %s36
      %p45 = scmp.eq.s32.totalorder %s16, 1
      %p46 = por %p44, %p45
      %p47 = scmp.ne.s32.totalorder %s36, %s37
      %p48 = scmp.eq.s32.totalorder %s16, 0
      %p49 = por %p47, %p48
      %p50 = scmp.ne.s32.totalorder %s36, %s37
      %p51 = scmp.eq.s32.totalorder %s17, 1
      %p52 = por %p50, %p51
      %p54 = scmp.ne.s32.totalorder %s37, %s53
      %p55 = scmp.eq.s32.totalorder %s17, 0
      %p56 = por %p54, %p55
      %s58 = sadd.s32 %s57, 1
      %p61 = scmp.eq.s32.totalorder %s11, 1
      %p62 = scmp.ne.s32.totalorder %s57, %s59
      %p63 = scmp.eq.s32.totalorder %s11, 0
      %p64 = por %p62, %p63
      %p65 = scmp.ne.s32.totalorder %s57, %s59
      %p66 = scmp.eq.s32.totalorder %s16, 1
      %p67 = por %p65, %p66
      %p68 = scmp.ne.s32.totalorder %s59, %s60
      %p69 = scmp.eq.s32.totalorder %s16, 0
      %p70 = por %p68, %p69
      %p71 = scmp.ne.s32.totalorder %s59, %s60
      %p72 = scmp.eq.s32.totalorder %s17, 1
      %p73 = por %p71, %p72
      %p75 = scmp.ne.s32.totalorder %s60, %s74
      %p76 = scmp.eq.s32.totalorder %s17, 0
      %p77 = por %p75, %p76
      %s78 = ssub.s32 %s18, %s30
      %s79 = ssub.s32 %s19, %s26
      %s80 = sor.u32 %s78, %s79
      %p81 = scmp.eq.s32.totalorder %s80, 0
      %s83 = sadd.s32 %s82, 1
      %s84 = scalar_select %p81, %s82, %s83
      %p87 = pneg %p81
      %p88 = scmp.eq.s32.totalorder %s11, 1
      %p89 = por %p87, %p88
      %p90 = scmp.ne.s32.totalorder %s82, %s85
      %p91 = scmp.eq.s32.totalorder %s11, 0
      %p92 = por %p90, %p91
      %p93 = scmp.ne.s32.totalorder %s82, %s85
      %p94 = scmp.eq.s32.totalorder %s16, 1
      %p95 = por %p93, %p94
      %p96 = scmp.ne.s32.totalorder %s85, %s86
      %p97 = scmp.eq.s32.totalorder %s16, 0
      %p98 = por %p96, %p97
      %p99 = scmp.ne.s32.totalorder %s85, %s86
      %p100 = scmp.eq.s32.totalorder %s17, 1
      %p101 = por %p99, %p100
      %p103 = scmp.ne.s32.totalorder %s86, %s102
      %p104 = scmp.eq.s32.totalorder %s17, 0
      %p105 = por %p103, %p104
      %p106 = scmp.le.s32.totalorder 1, %s11
      %p107 = scmp.lt.s32.totalorder %s11, 3
      %p108 = pnand %p106, %p107
      %p109 = pneg %p108
      // Predicated region
      $region9: #{tpu_custom_call.1} parent=5 // pred_check
        _
      $region10: #{tpu_custom_call.1} parent=5 // pred_check_branch
        %111 = sbr.rel (%p108) target = $region12
      $region11: #{tpu_custom_call.1} parent=5 // pred_region
        %s112 = ssub.s32 %s11, 1
        // Predicated region
        $region13: #{tpu_custom_call.1} parent=11 // pred_check
          %p113 = pneg %p70
        $region14: #{tpu_custom_call.1} parent=11 // pred_check_branch
          %115 = sbr.rel (%p113) target = $region16
        $region15: #{tpu_custom_call.1} parent=11 // pred_region
          _
        $region16: #{tpu_custom_call.1} parent=11 // pred_fallthru
          _
      $region12: #{tpu_custom_call.1} parent=5 // pred_fallthru
        _
      %p116 = scmp.lt.s32.totalorder %s11, 2
      // Predicated region
      $region17: #{tpu_custom_call.1} parent=5 // pred_check
        %p117 = pneg %p116
      $region18: #{tpu_custom_call.1} parent=5 // pred_check_branch
        %119 = sbr.rel (%p117) target = $region20
      $region19: #{tpu_custom_call.1} parent=5 // pred_region
        // Predicated region
        $region21: #{tpu_custom_call.1} parent=19 // pred_check
          %p120 = pneg %p43
        $region22: #{tpu_custom_call.1} parent=19 // pred_check_branch
          %122 = sbr.rel (%p120) target = $region24
        $region23: #{tpu_custom_call.1} parent=19 // pred_region
          %p123 = scmp.lt.s32.totalorder %s18, 1
          %s124 = scalar_select %p123, %s18, 1
          %s125 = smul.addr %s124, 2
          %s126 = smul.addr %s125, 8
          %s127 = scalar_lea.vmem %s0, %s126
        $region24: #{tpu_custom_call.1} parent=19 // pred_fallthru
          _
      $region20: #{tpu_custom_call.1} parent=5 // pred_fallthru
        _
      %p128 = scmp.le.s32.totalorder 1, %s11
      %p129 = scmp.lt.s32.totalorder %s11, 3
      %p130 = pnand %p128, %p129
      %p131 = pneg %p130
      // Predicated region
      $region25: #{tpu_custom_call.1} parent=5 // pred_check
        _
      $region26: #{tpu_custom_call.1} parent=5 // pred_check_branch
        %133 = sbr.rel (%p130) target = $region28
      $region27: #{tpu_custom_call.1} parent=5 // pred_region
        %s134 = ssub.s32 %s11, 1
        %p135 = scmp.lt.s32.totalorder %s20, 1
        %s136 = scalar_select %p135, %s20, 1
        %s137 = smul.addr %s136, 2
        %s138 = smul.addr %s137, 8
        %s139 = scalar_lea.vmem %s0, %s138
        %p140 = pneg %p49
        %p141 = pneg %p46
        %p142 = pneg %p70
        %p143 = pneg %p67
        %p144 = pneg %p98
        %p145 = pneg %p95
        %s146 = sand.u32 %s85, 1
        %s147 = scalar_lea.sflag [#allocation3], %s146
        %s148 = sand.u32 %s85, 1
        %s149 = smul.addr %s148, 16
        %s150 = scalar_lea.vmem [#allocation2], %s149
        %p151 = scmp.lt.s32.totalorder %s20, 1
        %s152 = scalar_select %p151, %s20, 1
        %s153 = smul.addr %s152, 2
        %s154 = smul.addr %s153, 8
        %s155 = scalar_lea.vmem %s0, %s154
        %s156 = smul.u32 %s21, 128
        %s157 = sshra.s32 %s156, 7
        %s158 = sand.u32 %s156, 127
        %s159 = smul.addr %s157, 8
        %s160 = scalar_lea.vmem %s155, %s159
        %v161 = vld [vmem:[%s160] sm:$0xff]
        %v162 = vld [vmem:[%s160 + $0x8] sm:$0xff]
        %v163 = vld [vmem:[%s1] sm:$0xff]
        %v164 = vld [vmem:[%s1 + $0x8] sm:$0xff]
        %s165 = scalar_lea.vmem %s1, 16
        %v166 = vld [vmem:[%s165] sm:$0xff]
        %v167 = vld [vmem:[%s165 + $0x8] sm:$0xff]
        %170 = vrot.lane.b32.xlu0 %v161, 127
        %v171 = vpop.permute.xlu0 %170
        %172 = vrot.lane.b32.xlu0 %v162, 127
        %v173 = vpop.permute.xlu0 %172
        %vm174 = vcmask 1039360
        %v175 = vsel %vm174, %v171, %v173
        %vm177 = vcmask 64512
        %v179 = vsel %vm177, %v166, 0
        %v182 = vsel %vm177, %v167, 0
        %184 = vmatprep.subr.mxu0 0.0
        %185 = vmatpush1.msra.mxu0 %v175
        %186 = vmatprep.subr.mxu0 0.0
        %187 = vmatpush1.msra.mxu0 0.0
        %188 = vmatprep.subr.mxu0 0.0
        %189 = vmatpush1.msra.mxu0 0.0
        %190 = vmatprep.subr.mxu0 0.0
        %191 = vmatpush1.msra.mxu0 0.0
        %192 = vmatprep.subr.mxu0 0.0
        %193 = vmatpush1.msra.mxu0 0.0
        %194 = vmatprep.subr.mxu0 0.0
        %195 = vmatpush1.msra.mxu0 0.0
        %196 = vmatprep.subr.mxu0 0.0
        %197 = vmatpush1.msra.mxu0 0.0
        %198 = vmatprep.subr.mxu0 0.0
        %199 = vmatpush1.msra.mxu0 0.0
        %200 = vmatprep.subr.mxu0 0.0
        %201 = vmatpush1.msra.mxu0 0.0
        %202 = vmatprep.subr.mxu0 0.0
        %203 = vmatpush1.msra.mxu0 0.0
        %204 = vmatprep.subr.mxu0 0.0
        %205 = vmatpush1.msra.mxu0 0.0
        %206 = vmatprep.subr.mxu0 0.0
        %207 = vmatpush1.msra.mxu0 0.0
        %208 = vmatprep.subr.mxu0 0.0
        %209 = vmatpush1.msra.mxu0 0.0
        %210 = vmatprep.subr.mxu0 0.0
        %211 = vmatpush1.msra.mxu0 0.0
        %212 = vmatprep.subr.mxu0 0.0
        %213 = vmatpush1.msra.mxu0 0.0
        %214 = vmatprep.subr.mxu0 0.0
        %215 = vmatpush1.msra.mxu0 0.0
        %216 = vmatprep.subr.mxu0 0.0
        %217 = vmatpush1.msra.mxu0 0.0
        %218 = vmatprep.subr.mxu0 0.0
        %219 = vmatpush1.msra.mxu0 0.0
        %220 = vmatprep.subr.mxu0 0.0
        %221 = vmatpush1.msra.mxu0 0.0
        %222 = vmatprep.subr.mxu0 0.0
        %223 = vmatpush1.msra.mxu0 0.0
        %224 = vmatprep.subr.mxu0 0.0
        %225 = vmatpush1.msra.mxu0 0.0
        %226 = vmatprep.subr.mxu0 0.0
        %227 = vmatpush1.msra.mxu0 0.0
        %228 = vmatprep.subr.mxu0 0.0
        %229 = vmatpush1.msra.mxu0 0.0
        %230 = vmatprep.subr.mxu0 0.0
        %231 = vmatpush1.msra.mxu0 0.0
        %232 = vmatprep.subr.mxu0 0.0
        %233 = vmatpush1.msra.mxu0 0.0
        %234 = vmatprep.subr.mxu0 0.0
        %235 = vmatpush1.msra.mxu0 0.0
        %236 = vmatprep.subr.mxu0 0.0
        %237 = vmatpush1.msra.mxu0 0.0
        %238 = vmatprep.subr.mxu0 0.0
        %239 = vmatpush1.msra.mxu0 0.0
        %240 = vmatprep.subr.mxu0 0.0
        %241 = vmatpush1.msra.mxu0 0.0
        %242 = vmatprep.subr.mxu0 0.0
        %243 = vmatpush1.msra.mxu0 0.0
        %244 = vmatprep.subr.mxu0 0.0
        %245 = vmatpush1.msra.mxu0 0.0
        %246 = vmatprep.subr.mxu0 0.0
        %247 = vmatpush1.msra.mxu0 0.0
        %248 = vmatprep.mubr.f32.mxu0 0.0
        %249 = vmatmul.mubr.f32.gmra.mrb[0].mxu0 %v179
        %v250 = vpop.f32.mrb[0].mxu0
        %v251 = vadd.f32 0.0, %v250
        %v252 = vpop.f32.mrb[0].mxu0
        %253 = vmatprep.mubr.f32.mxu0 0.0
        %254 = vmatmul.mubr.f32.gmra.mrb[0].mxu0 %v182
        %v255 = vpop.f32.mrb[0].mxu0
        %v256 = vadd.f32 0.0, %v255
        %v257 = vpop.f32.mrb[0].mxu0
        %258 = vdwg.mxu0
        %v260 = vsel %vm177, %v163, 0
        %v263 = vsel %vm177, %v164, 0
        %265 = vmatprep.subr.mxu0 0.0
        %266 = vmatpush1.msra.mxu0 %v161
        %267 = vmatprep.subr.mxu0 0.0
        %268 = vmatpush1.msra.mxu0 0.0
        %269 = vmatprep.subr.mxu0 0.0
        %270 = vmatpush1.msra.mxu0 0.0
        %271 = vmatprep.subr.mxu0 0.0
        %272 = vmatpush1.msra.mxu0 0.0
        %273 = vmatprep.subr.mxu0 0.0
        %274 = vmatpush1.msra.mxu0 0.0
        %275 = vmatprep.subr.mxu0 0.0
        %276 = vmatpush1.msra.mxu0 0.0
        %277 = vmatprep.subr.mxu0 0.0
        %278 = vmatpush1.msra.mxu0 0.0
        %279 = vmatprep.subr.mxu0 0.0
        %280 = vmatpush1.msra.mxu0 0.0
        %281 = vmatprep.subr.mxu0 0.0
        %282 = vmatpush1.msra.mxu0 0.0
        %283 = vmatprep.subr.mxu0 0.0
        %284 = vmatpush1.msra.mxu0 0.0
        %285 = vmatprep.subr.mxu0 0.0
        %286 = vmatpush1.msra.mxu0 0.0
        %287 = vmatprep.subr.mxu0 0.0
        %288 = vmatpush1.msra.mxu0 0.0
        %289 = vmatprep.subr.mxu0 0.0
        %290 = vmatpush1.msra.mxu0 0.0
        %291 = vmatprep.subr.mxu0 0.0
        %292 = vmatpush1.msra.mxu0 0.0
        %293 = vmatprep.subr.mxu0 0.0
        %294 = vmatpush1.msra.mxu0 0.0
        %295 = vmatprep.subr.mxu0 0.0
        %296 = vmatpush1.msra.mxu0 0.0
        %297 = vmatprep.subr.mxu0 0.0
        %298 = vmatpush1.msra.mxu0 0.0
        %299 = vmatprep.subr.mxu0 0.0
        %300 = vmatpush1.msra.mxu0 0.0
        %301 = vmatprep.subr.mxu0 0.0
        %302 = vmatpush1.msra.mxu0 0.0
        %303 = vmatprep.subr.mxu0 0.0
        %304 = vmatpush1.msra.mxu0 0.0
        %305 = vmatprep.subr.mxu0 0.0
        %306 = vmatpush1.msra.mxu0 0.0
        %307 = vmatprep.subr.mxu0 0.0
        %308 = vmatpush1.msra.mxu0 0.0
        %309 = vmatprep.subr.mxu0 0.0
        %310 = vmatpush1.msra.mxu0 0.0
        %311 = vmatprep.subr.mxu0 0.0
        %312 = vmatpush1.msra.mxu0 0.0
        %313 = vmatprep.subr.mxu0 0.0
        %314 = vmatpush1.msra.mxu0 0.0
        %315 = vmatprep.subr.mxu0 0.0
        %316 = vmatpush1.msra.mxu0 0.0
        %317 = vmatprep.subr.mxu0 0.0
        %318 = vmatpush1.msra.mxu0 0.0
        %319 = vmatprep.subr.mxu0 0.0
        %320 = vmatpush1.msra.mxu0 0.0
        %321 = vmatprep.subr.mxu0 0.0
        %322 = vmatpush1.msra.mxu0 0.0
        %323 = vmatprep.subr.mxu0 0.0
        %324 = vmatpush1.msra.mxu0 0.0
        %325 = vmatprep.subr.mxu0 0.0
        %326 = vmatpush1.msra.mxu0 0.0
        %327 = vmatprep.subr.mxu0 0.0
        %328 = vmatpush1.msra.mxu0 0.0
        %329 = vmatprep.mubr.f32.mxu0 0.0
        %330 = vmatmul.mubr.f32.gmra.mrb[0].mxu0 %v260
        %v331 = vpop.f32.mrb[0].mxu0
        %v332 = vadd.f32 %v251, %v331
        %v333 = vpop.f32.mrb[0].mxu0
        %334 = vmatprep.mubr.f32.mxu0 0.0
        %335 = vmatmul.mubr.f32.gmra.mrb[0].mxu0 %v263
        %v336 = vpop.f32.mrb[0].mxu0
        %v337 = vadd.f32 %v256, %v336
        %v338 = vpop.f32.mrb[0].mxu0
        %339 = vdwg.mxu0
        %s340 = scalar_lea.vmem %s1, 32
        %v341 = vld [vmem:[%s340] sm:$0xff]
        %v342 = vld [vmem:[%s340 + $0x8] sm:$0xff]
        %343 = vrot.lane.b32.xlu0 %v161, 126
        %v344 = vpop.permute.xlu0 %343
        %345 = vrot.lane.b32.xlu0 %v162, 126
        %v346 = vpop.permute.xlu0 %345
        %vm347 = vcmask 1031168
        %v348 = vsel %vm347, %v344, %v346
        %v351 = vsel %vm177, %v341, 0
        %v354 = vsel %vm177, %v342, 0
        %356 = vmatprep.subr.mxu0 0.0
        %357 = vmatpush1.msra.mxu0 %v348
        %358 = vmatprep.subr.mxu0 0.0
        %359 = vmatpush1.msra.mxu0 0.0
        %360 = vmatprep.subr.mxu0 0.0
        %361 = vmatpush1.msra.mxu0 0.0
        %362 = vmatprep.subr.mxu0 0.0
        %363 = vmatpush1.msra.mxu0 0.0
        %364 = vmatprep.subr.mxu0 0.0
        %365 = vmatpush1.msra.mxu0 0.0
        %366 = vmatprep.subr.mxu0 0.0
        %367 = vmatpush1.msra.mxu0 0.0
        %368 = vmatprep.subr.mxu0 0.0
        %369 = vmatpush1.msra.mxu0 0.0
        %370 = vmatprep.subr.mxu0 0.0
        %371 = vmatpush1.msra.mxu0 0.0
        %372 = vmatprep.subr.mxu0 0.0
        %373 = vmatpush1.msra.mxu0 0.0
        %374 = vmatprep.subr.mxu0 0.0
        %375 = vmatpush1.msra.mxu0 0.0
        %376 = vmatprep.subr.mxu0 0.0
        %377 = vmatpush1.msra.mxu0 0.0
        %378 = vmatprep.subr.mxu0 0.0
        %379 = vmatpush1.msra.mxu0 0.0
        %380 = vmatprep.subr.mxu0 0.0
        %381 = vmatpush1.msra.mxu0 0.0
        %382 = vmatprep.subr.mxu0 0.0
        %383 = vmatpush1.msra.mxu0 0.0
        %384 = vmatprep.subr.mxu0 0.0
        %385 = vmatpush1.msra.mxu0 0.0
        %386 = vmatprep.subr.mxu0 0.0
        %387 = vmatpush1.msra.mxu0 0.0
        %388 = vmatprep.subr.mxu0 0.0
        %389 = vmatpush1.msra.mxu0 0.0
        %390 = vmatprep.subr.mxu0 0.0
        %391 = vmatpush1.msra.mxu0 0.0
        %392 = vmatprep.subr.mxu0 0.0
        %393 = vmatpush1.msra.mxu0 0.0
        %394 = vmatprep.subr.mxu0 0.0
        %395 = vmatpush1.msra.mxu0 0.0
        %396 = vmatprep.subr.mxu0 0.0
        %397 = vmatpush1.msra.mxu0 0.0
        %398 = vmatprep.subr.mxu0 0.0
        %399 = vmatpush1.msra.mxu0 0.0
        %400 = vmatprep.subr.mxu0 0.0
        %401 = vmatpush1.msra.mxu0 0.0
        %402 = vmatprep.subr.mxu0 0.0
        %403 = vmatpush1.msra.mxu0 0.0
        %404 = vmatprep.subr.mxu0 0.0
        %405 = vmatpush1.msra.mxu0 0.0
        %406 = vmatprep.subr.mxu0 0.0
        %407 = vmatpush1.msra.mxu0 0.0
        %408 = vmatprep.subr.mxu0 0.0
        %409 = vmatpush1.msra.mxu0 0.0
        %410 = vmatprep.subr.mxu0 0.0
        %411 = vmatpush1.msra.mxu0 0.0
        %412 = vmatprep.subr.mxu0 0.0
        %413 = vmatpush1.msra.mxu0 0.0
        %414 = vmatprep.subr.mxu0 0.0
        %415 = vmatpush1.msra.mxu0 0.0
        %416 = vmatprep.subr.mxu0 0.0
        %417 = vmatpush1.msra.mxu0 0.0
        %418 = vmatprep.subr.mxu0 0.0
        %419 = vmatpush1.msra.mxu0 0.0
        %420 = vmatprep.mubr.f32.mxu0 0.0
        %421 = vmatmul.mubr.f32.gmra.mrb[0].mxu0 %v351
        %v422 = vpop.f32.mrb[0].mxu0
        %v423 = vadd.f32 0.0, %v422
        %v424 = vpop.f32.mrb[0].mxu0
        %425 = vmatprep.mubr.f32.mxu0 0.0
        %426 = vmatmul.mubr.f32.gmra.mrb[0].mxu0 %v354
        %v427 = vpop.f32.mrb[0].mxu0
        %v428 = vadd.f32 0.0, %v427
        %v429 = vpop.f32.mrb[0].mxu0
        %430 = vdwg.mxu0
        %v431 = vadd.f32 %v332, %v423
        %v432 = vadd.f32 %v337, %v428
        %433 = vst [vmem:[%s150] sm:$0xff] %v431
        %434 = vst [vmem:[%s150 + $0x8] sm:$0xff] %v432
        %s435 = sand.u32 %s85, 1
        %s436 = scalar_lea.sflag [#allocation3], %s435
        %s437 = sand.u32 %s85, 1
        %s438 = smul.addr %s437, 16
        %s439 = scalar_lea.vmem [#allocation2], %s438
        // Predicated region
        $region29: #{tpu_custom_call.1} parent=27 // pred_check
          %p440 = pneg %p95
        $region30: #{tpu_custom_call.1} parent=27 // pred_check_branch
          %442 = sbr.rel (%p440) target = $region32
        $region31: #{tpu_custom_call.1} parent=27 // pred_region
          %s444 = ssub.s32 256, 256
          %445 = vsyncadd %s436, %s444
          %s446 = smul.addr %s20, 2
          %s447 = sadd.s32 %s21, %s446
          %s448 = smul.addr %s447, 128
          %s449 = scalar_lea.hbm %s2, %s448
          %s450 = sshll.u32 %s439, 4
          %s451 = int_to_ptr.vmem [resolvable:$true] %s450
          %456 = dma.vmem_to_hbm [thread:$0]  %s451, 256, %s449, %s436, 128, 128, 8
        $region32: #{tpu_custom_call.1} parent=27 // pred_fallthru
          _
      $region28: #{tpu_custom_call.1} parent=5 // pred_fallthru
        _
      %p457 = scmp.le.s32.totalorder 2, %s11
      // Predicated region
      $region33: #{tpu_custom_call.1} parent=5 // pred_check
        %p458 = pneg %p457
      $region34: #{tpu_custom_call.1} parent=5 // pred_check_branch
        %460 = sbr.rel (%p458) target = $region36
      $region35: #{tpu_custom_call.1} parent=5 // pred_region
        %s461 = ssub.s32 %s11, 2
        // Predicated region
        $region37: #{tpu_custom_call.1} parent=35 // pred_check
          %p462 = pneg %p101
        $region38: #{tpu_custom_call.1} parent=35 // pred_check_branch
          %464 = sbr.rel (%p462) target = $region40
        $region39: #{tpu_custom_call.1} parent=35 // pred_region
          %s465 = sand.u32 %s86, 1
          %s466 = scalar_lea.sflag [#allocation3], %s465
          %s467 = sand.u32 %s86, 1
          %s468 = smul.addr %s467, 16
          %s469 = scalar_lea.vmem [#allocation2], %s468
          %470 = dma.done %s466, 256
        $region40: #{tpu_custom_call.1} parent=35 // pred_fallthru
          _
      $region36: #{tpu_custom_call.1} parent=5 // pred_fallthru
        _
    $region6: #{tpu_custom_call.1} parent=1 // loop_footer
      %s15 = sadd.s32 1, %s11
    $region7: #{tpu_custom_call.1} parent=1 // loop_footer_branch
      %10 = sbr.rel target = $region3
    $region8: #{tpu_custom_call.1} parent=1 // loop_exit
      _
    %471 = vsyncpa [#allocation3], 1
    %s472 = scalar_lea.sflag [#allocation3], 1
    %473 = vsyncpa %s472, 1

</llo_original>
